<compile_context>
chip_gen: v5e
topology: v5e:2x2
jax: 0.10.0
libtpu: 0.0.40
codegen_flags: <defaults>
</compile_context>

<pallas_src>
import functools

import jax
import jax.numpy as jnp
from jax import lax
from jax.experimental import pallas as pl
from jax.experimental.pallas import tpu as pltpu


def _vmem_budget_and_limit():
    """Generation-aware VMEM sizing: ~40% of capacity as the data-block budget,
    ~80% as the scoped limit handed to Mosaic."""
    cap = 64 * 1024 * 1024  # conservative default (v7x)
    try:
        info = pltpu.get_tpu_info()
        cap = int(getattr(info, "vmem_capacity_bytes", cap) or cap)
    except Exception:
        pass
    return (2 * cap) // 5, (4 * cap) // 5


def _pick_spatial_tile(hwp, c, itemsize, budget):
    """Largest lane (spatial) tile that divides the padded HW, is a multiple of
    128 and keeps the double-buffered blocks of the worst pass inside budget."""
    if hwp <= 128:
        return hwp
    w_bytes = 4 * c * c * itemsize              # w1 + w2, double-buffered
    # Per-lane-column cost of the worst pass (pass 2): a, b, out blocks double-
    # buffered plus ~2 f32 (C, t_hw) matmul temporaries.  Pass-1 accumulators
    # are lane-reduced to (C, 1) so they no longer scale with the tile.
    per_col = 6 * c * itemsize + 8 * c
    avail = max(budget - w_bytes, 128 * per_col)
    cap = max(128, (avail // per_col // 128) * 128)
    cap = min(cap, hwp)
    t = cap
    while hwp % t != 0:
        t -= 128
    return t
    # TODO(synk): K-block the C contraction (extra grid axis + f32 accumulator)
    # for very large C where the (C, C) weight halves dominate VMEM.


# ---------------------------------------------------------------------------
# Fused single-kernel path: a, b stay VMEM-resident; stats + folded BN affine
# + apply all happen in one kernel (one HBM read of a/b, one write of out).
# ---------------------------------------------------------------------------
def _fused_kernel(a_ref, b_ref, w1_ref, w2_ref, g_ref, bt_ref, o_ref,
                  sum_sc, sumsq_sc, *, m_true, eps):
    nb = a_ref.shape[0]

    def conv(n):
        # (C, C) @ (C, HWp) -> (C, HWp), f32 accumulation on the MXU.
        return (jnp.dot(w1_ref[...], a_ref[n], preferred_element_type=jnp.float32)
                + jnp.dot(w2_ref[...], b_ref[n], preferred_element_type=jnp.float32))

    sum_sc[...] = jnp.zeros_like(sum_sc)
    sumsq_sc[...] = jnp.zeros_like(sumsq_sc)

    @pl.loop(0, nb)
    def _(n):
        y = conv(n)
        # Lane reduction rides the otherwise-idle XLU slot; accumulators stay (C, 1).
        sum_sc[...] += jnp.sum(y, axis=-1, keepdims=True)
        sumsq_sc[...] += jnp.sum(y * y, axis=-1, keepdims=True)

    inv_m = jnp.float32(1.0 / m_true)
    mean = sum_sc[...] * inv_m
    # TODO(synk): E[y^2]-mean^2 in f32 can lose precision when |mean| >> std;
    # switch to a centered second accumulation if bit-tight PyTorch agreement
    # is needed.
    var = sumsq_sc[...] * inv_m - mean * mean          # biased variance (PyTorch BN)
    inv = lax.rsqrt(var + jnp.float32(eps))            # EUP rsqrt
    scale = g_ref[...] * inv
    shift = bt_ref[...] - mean * scale

    @pl.loop(0, nb)
    def _(n):
        y = conv(n)   # recompute: data already VMEM-resident, MXU is far from busy
        o_ref[n] = (y * scale + shift).astype(o_ref.dtype)


# ---------------------------------------------------------------------------
# Tiled fallback, pass 1: lane-reduced per-batch partial sum / sum-of-squares.
# Batch axis is "parallel" (per-n accumulator blocks -> v7x megacore split).
# ---------------------------------------------------------------------------
def _stats_kernel(a_ref, b_ref, w1_ref, w2_ref, sum_ref, sumsq_ref):
    @pl.when(pl.program_id(1) == 0)
    def _():
        sum_ref[...] = jnp.zeros_like(sum_ref)
        sumsq_ref[...] = jnp.zeros_like(sumsq_ref)

    y = (jnp.dot(w1_ref[...], a_ref[0], preferred_element_type=jnp.float32)
         + jnp.dot(w2_ref[...], b_ref[0], preferred_element_type=jnp.float32))
    sum_ref[0] += jnp.sum(y, axis=-1, keepdims=True)
    sumsq_ref[0] += jnp.sum(y * y, axis=-1, keepdims=True)


# ---------------------------------------------------------------------------
# Tiled fallback, pass 2: recompute the matmul and apply the folded BN affine.
# Output lane dim = spatial tile (multiple of 128) -> dense, unmasked stores.
# ---------------------------------------------------------------------------
def _apply_kernel(a_ref, b_ref, w1_ref, w2_ref, scale_ref, shift_ref, o_ref):
    y = (jnp.dot(w1_ref[...], a_ref[0], preferred_element_type=jnp.float32)
         + jnp.dot(w2_ref[...], b_ref[0], preferred_element_type=jnp.float32))
    o_ref[0] = (y * scale_ref[...] + shift_ref[...]).astype(o_ref.dtype)


def _conv_bn_pallas(a, b, w1, w2, gamma, beta, eps, hw_true, force_tiled=False):
    """a, b: [N, C, HWp] (NCHW flattened + zero-padded spatially), w1/w2: [C, C].
    Returns BN(conv1x1(cat)) with batch statistics over the first hw_true
    spatial positions, shape [N, C, HWp]."""
    N, C, HWp = a.shape
    itemsize = a.dtype.itemsize
    budget, limit = _vmem_budget_and_limit()
    m = float(N * hw_true)
    g = gamma.astype(jnp.float32).reshape(C, 1)
    bt = beta.astype(jnp.float32).reshape(C, 1)

    fused_bytes = (3 * N * C * HWp * itemsize     # a, b, out fully VMEM-resident
                   + 2 * C * HWp * 4              # f32 matmul temporaries
                   + 2 * C * C * itemsize)        # w1, w2
    if (not force_tiled) and fused_bytes <= budget:
        return pl.pallas_call(
            functools.partial(_fused_kernel, m_true=m, eps=float(eps)),
            out_shape=jax.ShapeDtypeStruct((N, C, HWp), a.dtype),
            scratch_shapes=[pltpu.VMEM((C, 1), jnp.float32),
                            pltpu.VMEM((C, 1), jnp.float32)],
            compiler_params=pltpu.CompilerParams(vmem_limit_bytes=limit),
        )(a, b, w1, w2, g, bt)

    # ---------------- tiled two-pass fallback (large layers) ----------------
    t_hw = _pick_spatial_tile(HWp, C, itemsize, budget)
    T = HWp // t_hw
    grid = (N, T)

    feat_spec = pl.BlockSpec((1, C, t_hw), lambda n, t: (n, 0, t))
    w_spec = pl.BlockSpec((C, C), lambda n, t: (0, 0))
    # TODO(synk): single-buffer the constant weight blocks (pl.Buffered(1)) once
    # that is robust across jax versions; for now they are counted in the budget.
    stat_spec = pl.BlockSpec((1, C, 1), lambda n, t: (n, 0, 0))

    s_part, ss_part = pl.pallas_call(
        _stats_kernel,
        out_shape=(jax.ShapeDtypeStruct((N, C, 1), jnp.float32),
                   jax.ShapeDtypeStruct((N, C, 1), jnp.float32)),
        grid_spec=pltpu.PrefetchScalarGridSpec(
            num_scalar_prefetch=0,
            grid=grid,
            in_specs=[feat_spec, feat_spec, w_spec, w_spec],
            out_specs=(stat_spec, stat_spec),
        ),
        compiler_params=pltpu.CompilerParams(
            dimension_semantics=("parallel", "arbitrary"),
            vmem_limit_bytes=limit),
    )(a, b, w1, w2)

    # Fold BN into a per-channel affine once (tiny (C,) math in plain JAX).
    s = jnp.sum(s_part[:, :, 0], axis=0)
    ss = jnp.sum(ss_part[:, :, 0], axis=0)
    mean = (s / m).reshape(C, 1)
    var = (ss / m).reshape(C, 1) - mean * mean          # biased variance
    inv = lax.rsqrt(var + jnp.float32(eps))
    scale = g * inv
    shift = bt - mean * scale

    return pl.pallas_call(
        _apply_kernel,
        out_shape=jax.ShapeDtypeStruct((N, C, HWp), a.dtype),
        grid_spec=pltpu.PrefetchScalarGridSpec(
            num_scalar_prefetch=0,
            grid=grid,
            in_specs=[feat_spec, feat_spec, w_spec, w_spec,
                      pl.BlockSpec((C, 1), lambda n, t: (0, 0)),
                      pl.BlockSpec((C, 1), lambda n, t: (0, 0))],
            out_specs=feat_spec,
        ),
        compiler_params=pltpu.CompilerParams(
            dimension_semantics=("parallel", "parallel"),
            vmem_limit_bytes=limit),
    )(a, b, w1, w2, scale, shift)


def single_side_nddr(feature1, feature2, conv_weight, gamma, beta, *,
                     reverse, eps=1e-3, force_tiled=False):
    """feature1/feature2: NCHW [N, C, H, W]. conv_weight: [C, 2C, 1, 1]."""
    N, C, H, W = feature1.shape
    HW = H * W
    if reverse:
        first, second = feature1, feature2        # cat([f1, f2], dim=1)
    else:
        first, second = feature2, feature1        # cat([f2, f1], dim=1)

    compute_dtype = feature1.dtype
    a = first.reshape(N, C, HW)                    # free reshape, no transpose
    b = second.reshape(N, C, HW)

    # Zero-pad the spatial axis to a multiple of 128: lane-dense stores and a
    # real pipelining axis.  Padded columns of y are exactly 0, so stats stay
    # exact as long as the divisor is N*HW (true size); pad is sliced off.
    HWp = max(128, ((HW + 127) // 128) * 128)
    if HWp != HW:
        pad = ((0, 0), (0, 0), (0, HWp - HW))
        a = jnp.pad(a, pad)
        b = jnp.pad(b, pad)

    w = conv_weight.reshape(C, 2 * C)
    w1 = w[:, :C].astype(compute_dtype)            # weights for the first half of the concat
    w2 = w[:, C:].astype(compute_dtype)            # weights for the second half
    # TODO(synk): on v5e with f32 inputs and large C, cast matmul operands to
    # bf16 (keeping f32 stats/affine) to stay off the slow f32 MXU path.

    y = _conv_bn_pallas(a, b, w1, w2, gamma, beta, eps, HW, force_tiled=force_tiled)
    processed = y[:, :, :HW].reshape(N, C, H, W)

    if reverse:
        return processed, feature2
    return feature1, processed


# ---------------------------------------------------------------------------
# Plain-JAX reference (for correctness check)
# ---------------------------------------------------------------------------
def _reference(feature1, feature2, conv_weight, gamma, beta, *, reverse, eps=1e-3):
    if reverse:
        cat = jnp.concatenate([feature1, feature2], axis=1)
    else:
        cat = jnp.concatenate([feature2, feature1], axis=1)
    w2d = conv_weight.reshape(conv_weight.shape[0], conv_weight.shape[1])
    y = jnp.einsum("oc,nchw->nohw", w2d, cat)
    mean = jnp.mean(y, axis=(0, 2, 3), keepdims=True)
    var = jnp.mean((y - mean) ** 2, axis=(0, 2, 3), keepdims=True)
    yn = (y - mean) / jnp.sqrt(var + eps)
    yn = yn * gamma.reshape(1, -1, 1, 1) + beta.reshape(1, -1, 1, 1)
    if reverse:
        return yn, feature2
    return feature1, yn


if __name__ == "__main__":
    key = jax.random.PRNGKey(0)

    def make_params(C):
        # Deterministic init matching the module with cfg.MODEL.INIT=[0.9, 0.1]:
        # conv.weight = cat([eye*0.9, eye*0.1], dim=1); BN weight=1, bias=0.
        eye = jnp.eye(C, dtype=jnp.float32)
        conv_weight = jnp.concatenate([eye * 0.9, eye * 0.1], axis=1).reshape(C, 2 * C, 1, 1)
        return conv_weight, jnp.ones((C,), jnp.float32), jnp.zeros((C,), jnp.float32)

    # Case 1: fused in-VMEM path, HW already a multiple of 128 (16x16=256).
    N, C, H, W = 2, 4, 16, 16
    k1, k2 = jax.random.split(key)
    f1 = jax.random.normal(k1, (N, C, H, W), dtype=jnp.float32)
    f2 = jax.random.normal(k2, (N, C, H, W), dtype=jnp.float32)
    cw, gmm, bta = make_params(C)

    for rev in (False, True):
        o1, o2 = single_side_nddr(f1, f2, cw, gmm, bta, reverse=rev)
        o1, o2 = jax.block_until_ready(o1), jax.block_until_ready(o2)
        r1, r2 = _reference(f1, f2, cw, gmm, bta, reverse=rev)
        assert o1.shape == (N, C, H, W) and o2.shape == (N, C, H, W)
        assert jnp.allclose(o1, r1, atol=1e-4), "fused path out1 mismatch"
        assert jnp.allclose(o2, r2, atol=1e-4), "fused path out2 mismatch"

    # Case 2: force the tiled two-pass fallback on the same shapes.
    o1, o2 = single_side_nddr(f1, f2, cw, gmm, bta, reverse=False, force_tiled=True)
    o1, o2 = jax.block_until_ready(o1), jax.block_until_ready(o2)
    r1, r2 = _reference(f1, f2, cw, gmm, bta, reverse=False)
    assert jnp.allclose(o1, r1, atol=1e-4) and jnp.allclose(o2, r2, atol=1e-4), \
        "tiled path mismatch"

    # Case 3: ragged spatial size (7x7=49 -> zero-padded to 128 lanes), both paths.
    N, C, H, W = 2, 8, 7, 7
    k3, k4 = jax.random.split(k1)
    f1s = jax.random.normal(k3, (N, C, H, W), dtype=jnp.float32)
    f2s = jax.random.normal(k4, (N, C, H, W), dtype=jnp.float32)
    cws, gs, bs = make_params(C)
    for forced in (False, True):
        o1, o2 = single_side_nddr(f1s, f2s, cws, gs, bs, reverse=False, force_tiled=forced)
        o1, o2 = jax.block_until_ready(o1), jax.block_until_ready(o2)
        r1, r2 = _reference(f1s, f2s, cws, gs, bs, reverse=False)
        assert jnp.allclose(o1, r1, atol=1e-4) and jnp.allclose(o2, r2, atol=1e-4), \
            "padded-HW path mismatch"

    print("KERNEL_OK")
</pallas_src>

<mosaic_0001>
module attributes {stable_mosaic.version = 11 : i64} {
  func.func @_fused_kernel(%arg0: memref<2x4x256xf32, #tpu.memory_space<vmem>>, %arg1: memref<2x4x256xf32, #tpu.memory_space<vmem>>, %arg2: memref<4x4xf32, #tpu.memory_space<vmem>>, %arg3: memref<4x4xf32, #tpu.memory_space<vmem>>, %arg4: memref<4x1xf32, #tpu.memory_space<vmem>>, %arg5: memref<4x1xf32, #tpu.memory_space<vmem>>, %arg6: memref<2x4x256xf32, #tpu.memory_space<vmem>>, %arg7: memref<4x1xf32, #tpu.memory_space<vmem>>, %arg8: memref<4x1xf32, #tpu.memory_space<vmem>>) attributes {dimension_semantics = [], scalar_prefetch = 0 : i64, scratch_operands = 2 : i64, tpu.core_type = #tpu.core_type<tc>} {
    %cst = arith.constant 0.000000e+00 : f32
    %0 = vector.broadcast %cst : f32 to vector<4x1xf32>
    %c0 = arith.constant 0 : index
    %c0_0 = arith.constant 0 : index
    %1 = vector.load %arg7[%c0, %c0_0] : memref<4x1xf32, #tpu.memory_space<vmem>>, vector<4x1xf32>
    tpu.vector_store %arg7[%c0, %c0_0], %0 {strides = array<i32>} : memref<4x1xf32, #tpu.memory_space<vmem>>, vector<4x1xf32>,
    %cst_1 = arith.constant 0.000000e+00 : f32
    %2 = vector.broadcast %cst_1 : f32 to vector<4x1xf32>
    %c0_2 = arith.constant 0 : index
    %c0_3 = arith.constant 0 : index
    %3 = vector.load %arg8[%c0_2, %c0_3] : memref<4x1xf32, #tpu.memory_space<vmem>>, vector<4x1xf32>
    tpu.vector_store %arg8[%c0_2, %c0_3], %2 {strides = array<i32>} : memref<4x1xf32, #tpu.memory_space<vmem>>, vector<4x1xf32>,
    %c0_i32 = arith.constant 0 : i32
    %c2_i32 = arith.constant 2 : i32
    %4 = arith.addi %c0_i32, %c2_i32 : i32
    %c1_i32 = arith.constant 1 : i32
    scf.for %arg9 = %c0_i32 to %4 step %c1_i32  : i32 {
      %c1_i32_20 = arith.constant 1 : i32
      %22 = arith.muli %arg9, %c1_i32_20 : i32
      %c0_i32_21 = arith.constant 0 : i32
      %23 = arith.addi %c0_i32_21, %22 : i32
      %c0_22 = arith.constant 0 : index
      %c0_23 = arith.constant 0 : index
      %24 = vector.load %arg2[%c0_22, %c0_23] : memref<4x4xf32, #tpu.memory_space<vmem>>, vector<4x4xf32>
      %25 = arith.index_cast %23 : i32 to index
      %c0_24 = arith.constant 0 : index
      %c0_25 = arith.constant 0 : index
      %26 = vector.load %arg0[%25, %c0_24, %c0_25] : memref<2x4x256xf32, #tpu.memory_space<vmem>>, vector<1x4x256xf32>
      %27 = vector.shape_cast %26 : vector<1x4x256xf32> to vector<4x256xf32>
      %cst_26 = arith.constant dense<0.000000e+00> : vector<4x256xf32>
      %28 = tpu.matmul %24, %27, %cst_26 {dimension_numbers = #tpu.dot_dimension_numbers<[1], [0], [0], [1], [0, 0, 1, 1], [], []>} : vector<4x4xf32>, vector<4x256xf32>, vector<4x256xf32> -> vector<4x256xf32>
      %c0_27 = arith.constant 0 : index
      %c0_28 = arith.constant 0 : index
      %29 = vector.load %arg3[%c0_27, %c0_28] : memref<4x4xf32, #tpu.memory_space<vmem>>, vector<4x4xf32>
      %30 = arith.index_cast %23 : i32 to index
      %c0_29 = arith.constant 0 : index
      %c0_30 = arith.constant 0 : index
      %31 = vector.load %arg1[%30, %c0_29, %c0_30] : memref<2x4x256xf32, #tpu.memory_space<vmem>>, vector<1x4x256xf32>
      %32 = vector.shape_cast %31 : vector<1x4x256xf32> to vector<4x256xf32>
      %cst_31 = arith.constant dense<0.000000e+00> : vector<4x256xf32>
      %33 = tpu.matmul %29, %32, %cst_31 {dimension_numbers = #tpu.dot_dimension_numbers<[1], [0], [0], [1], [0, 0, 1, 1], [], []>} : vector<4x4xf32>, vector<4x256xf32>, vector<4x256xf32> -> vector<4x256xf32>
      %34 = arith.addf %28, %33 : vector<4x256xf32>
      %c0_32 = arith.constant 0 : index
      %c0_33 = arith.constant 0 : index
      %35 = vector.load %arg7[%c0_32, %c0_33] : memref<4x1xf32, #tpu.memory_space<vmem>>, vector<4x1xf32>
      %cst_34 = arith.constant dense<0.000000e+00> : vector<4xf32>
      %36 = vector.multi_reduction <add>, %34, %cst_34 [1] : vector<4x256xf32> to vector<4xf32>
      %37 = vector.shape_cast %36 : vector<4xf32> to vector<4x1xf32>
      %38 = arith.addf %35, %37 : vector<4x1xf32>
      %c0_35 = arith.constant 0 : index
      %c0_36 = arith.constant 0 : index
      %39 = vector.load %arg7[%c0_35, %c0_36] : memref<4x1xf32, #tpu.memory_space<vmem>>, vector<4x1xf32>
      tpu.vector_store %arg7[%c0_35, %c0_36], %38 {strides = array<i32>} : memref<4x1xf32, #tpu.memory_space<vmem>>, vector<4x1xf32>,
      %c0_37 = arith.constant 0 : index
      %c0_38 = arith.constant 0 : index
      %40 = vector.load %arg8[%c0_37, %c0_38] : memref<4x1xf32, #tpu.memory_space<vmem>>, vector<4x1xf32>
      %41 = arith.mulf %34, %34 : vector<4x256xf32>
      %cst_39 = arith.constant dense<0.000000e+00> : vector<4xf32>
      %42 = vector.multi_reduction <add>, %41, %cst_39 [1] : vector<4x256xf32> to vector<4xf32>
      %43 = vector.shape_cast %42 : vector<4xf32> to vector<4x1xf32>
      %44 = arith.addf %40, %43 : vector<4x1xf32>
      %c0_40 = arith.constant 0 : index
      %c0_41 = arith.constant 0 : index
      %45 = vector.load %arg8[%c0_40, %c0_41] : memref<4x1xf32, #tpu.memory_space<vmem>>, vector<4x1xf32>
      tpu.vector_store %arg8[%c0_40, %c0_41], %44 {strides = array<i32>} : memref<4x1xf32, #tpu.memory_space<vmem>>, vector<4x1xf32>,
    }
    %c2_i32_4 = arith.constant 2 : i32
    %c0_5 = arith.constant 0 : index
    %c0_6 = arith.constant 0 : index
    %5 = vector.load %arg7[%c0_5, %c0_6] : memref<4x1xf32, #tpu.memory_space<vmem>>, vector<4x1xf32>
    %cst_7 = arith.constant 0.001953125 : f32
    %6 = vector.broadcast %cst_7 : f32 to vector<4x1xf32>
    %7 = arith.mulf %5, %6 : vector<4x1xf32>
    %c0_8 = arith.constant 0 : index
    %c0_9 = arith.constant 0 : index
    %8 = vector.load %arg8[%c0_8, %c0_9] : memref<4x1xf32, #tpu.memory_space<vmem>>, vector<4x1xf32>
    %cst_10 = arith.constant 0.001953125 : f32
    %9 = vector.broadcast %cst_10 : f32 to vector<4x1xf32>
    %10 = arith.mulf %8, %9 : vector<4x1xf32>
    %11 = arith.mulf %7, %7 : vector<4x1xf32>
    %12 = arith.subf %10, %11 : vector<4x1xf32>
    %cst_11 = arith.constant 1.000000e-03 : f32
    %13 = vector.broadcast %cst_11 : f32 to vector<4x1xf32>
    %14 = arith.addf %12, %13 : vector<4x1xf32>
    %15 = math.rsqrt %14 : vector<4x1xf32>
    %c0_12 = arith.constant 0 : index
    %c0_13 = arith.constant 0 : index
    %16 = vector.load %arg4[%c0_12, %c0_13] : memref<4x1xf32, #tpu.memory_space<vmem>>, vector<4x1xf32>
    %17 = arith.mulf %16, %15 : vector<4x1xf32>
    %c0_14 = arith.constant 0 : index
    %c0_15 = arith.constant 0 : index
    %18 = vector.load %arg5[%c0_14, %c0_15] : memref<4x1xf32, #tpu.memory_space<vmem>>, vector<4x1xf32>
    %19 = arith.mulf %7, %17 : vector<4x1xf32>
    %20 = arith.subf %18, %19 : vector<4x1xf32>
    %c0_i32_16 = arith.constant 0 : i32
    %c2_i32_17 = arith.constant 2 : i32
    %21 = arith.addi %c0_i32_16, %c2_i32_17 : i32
    %c1_i32_18 = arith.constant 1 : i32
    scf.for %arg9 = %c0_i32_16 to %21 step %c1_i32_18  : i32 {
      %c1_i32_20 = arith.constant 1 : i32
      %22 = arith.muli %arg9, %c1_i32_20 : i32
      %c0_i32_21 = arith.constant 0 : i32
      %23 = arith.addi %c0_i32_21, %22 : i32
      %c0_22 = arith.constant 0 : index
      %c0_23 = arith.constant 0 : index
      %24 = vector.load %arg2[%c0_22, %c0_23] : memref<4x4xf32, #tpu.memory_space<vmem>>, vector<4x4xf32>
      %25 = arith.index_cast %23 : i32 to index
      %c0_24 = arith.constant 0 : index
      %c0_25 = arith.constant 0 : index
      %26 = vector.load %arg0[%25, %c0_24, %c0_25] : memref<2x4x256xf32, #tpu.memory_space<vmem>>, vector<1x4x256xf32>
      %27 = vector.shape_cast %26 : vector<1x4x256xf32> to vector<4x256xf32>
      %cst_26 = arith.constant dense<0.000000e+00> : vector<4x256xf32>
      %28 = tpu.matmul %24, %27, %cst_26 {dimension_numbers = #tpu.dot_dimension_numbers<[1], [0], [0], [1], [0, 0, 1, 1], [], []>} : vector<4x4xf32>, vector<4x256xf32>, vector<4x256xf32> -> vector<4x256xf32>
      %c0_27 = arith.constant 0 : index
      %c0_28 = arith.constant 0 : index
      %29 = vector.load %arg3[%c0_27, %c0_28] : memref<4x4xf32, #tpu.memory_space<vmem>>, vector<4x4xf32>
      %30 = arith.index_cast %23 : i32 to index
      %c0_29 = arith.constant 0 : index
      %c0_30 = arith.constant 0 : index
      %31 = vector.load %arg1[%30, %c0_29, %c0_30] : memref<2x4x256xf32, #tpu.memory_space<vmem>>, vector<1x4x256xf32>
      %32 = vector.shape_cast %31 : vector<1x4x256xf32> to vector<4x256xf32>
      %cst_31 = arith.constant dense<0.000000e+00> : vector<4x256xf32>
      %33 = tpu.matmul %29, %32, %cst_31 {dimension_numbers = #tpu.dot_dimension_numbers<[1], [0], [0], [1], [0, 0, 1, 1], [], []>} : vector<4x4xf32>, vector<4x256xf32>, vector<4x256xf32> -> vector<4x256xf32>
      %34 = arith.addf %28, %33 : vector<4x256xf32>
      %35 = vector.broadcast %17 : vector<4x1xf32> to vector<4x256xf32>
      %36 = arith.mulf %34, %35 : vector<4x256xf32>
      %37 = vector.broadcast %20 : vector<4x1xf32> to vector<4x256xf32>
      %38 = arith.addf %36, %37 : vector<4x256xf32>
      %39 = arith.index_cast %23 : i32 to index
      %c0_32 = arith.constant 0 : index
      %c0_33 = arith.constant 0 : index
      %40 = vector.load %arg6[%39, %c0_32, %c0_33] : memref<2x4x256xf32, #tpu.memory_space<vmem>>, vector<1x4x256xf32>
      %41 = vector.shape_cast %40 : vector<1x4x256xf32> to vector<4x256xf32>
      %42 = vector.shape_cast %38 : vector<4x256xf32> to vector<1x4x256xf32>
      tpu.vector_store %arg6[%39, %c0_32, %c0_33], %42 {strides = array<i32>} : memref<2x4x256xf32, #tpu.memory_space<vmem>>, vector<1x4x256xf32>,
    }
    %c2_i32_19 = arith.constant 2 : i32
    return
  }
}

</mosaic_0001>

<llo_original>
// kernel: tpu_custom_call.1
$region0: #{tpu_custom_call.1}
  #allocation0 [shape = 'u32[]', space=smem, size = 0x4, offset = 0x4, fixed_abs, tag = 'smem constant byte address 0x4 - core index']
  #allocation1 [shape = 'u32[72,128]{1,0:T(1,128)}', space=vmem, size = 0x9000, scoped, tag = 'internal scratch']
  #allocation2 [shape = 'f32[4,1]{1,0:T(4,128)}', space=vmem, size = 0x800, scoped, tag = 'scratch operand']
  #allocation3 [shape = 'f32[4,1]{1,0:T(4,128)}', space=vmem, size = 0x800, scoped, tag = 'scratch operand']
  %s0 = inlined_call_operand.hbm [shape: f32[2,4,256], index: 0, kind: input, shape index: {}]
  %s1 = inlined_call_operand.hbm [shape: f32[2,4,256], index: 1, kind: input, shape index: {}]
  %s2 = inlined_call_operand.vmem [shape: f32[4,4], index: 2, kind: input, shape index: {}]
  %s3 = inlined_call_operand.vmem [shape: f32[4,4], index: 3, kind: input, shape index: {}]
  %s4 = inlined_call_operand.vmem [shape: f32[4,1], index: 4, kind: input, shape index: {}]
  %s5 = inlined_call_operand.vmem [shape: f32[4,1], index: 5, kind: input, shape index: {}]
  %s6 = inlined_call_operand.hbm [shape: f32[2,4,256], index: 6, kind: output, shape index: {}]
  %s7 = sld [smem:[#allocation0]]
  $region56: #{tpu_custom_call.1} parent=0
    _
  %s9 = ssub.s32 1, %s7
  %s10 = scalar_select 0, %s9, %s7
  $region1: #{tpu_custom_call.1} parent=0
    #allocation4 [shape = 'u8[8192]{0}', space=vmem, size = 0x2000, scoped, tag = 'input window, operand 0, single buffered']
    #allocation5 [shape = 's32[1]{0}', space=sflag, size = 0x4, scoped, tag = 'scoped memory for tpu_custom_call.1']
    #allocation6 [shape = 's32[1]{0}', space=sflag, size = 0x4, scoped, tag = 'scoped memory for tpu_custom_call.1']
    #allocation7 [shape = 'u8[8192]{0}', space=vmem, size = 0x2000, scoped, tag = 'input window, operand 1, single buffered']
    #allocation8 [shape = 's32[1]{0}', space=sflag, size = 0x4, scoped, tag = 'scoped memory for tpu_custom_call.1']
    #allocation9 [shape = 'u8[8192]{0}', space=vmem, size = 0x2000, scoped, tag = 'output window, operand 0, single buffered']
    %11 = vsyncpa [#allocation5], 0
    %12 = vsyncpa [#allocation8], 0
    %13 = vsyncpa [#allocation6], 0
    // Predicated region
    $region2: #{tpu_custom_call.1} parent=1 // pred_check
      _
    $region3: #{tpu_custom_call.1} parent=1 // pred_check_branch
      %15 = sbr.rel (0) target = $region5
    $region4: #{tpu_custom_call.1} parent=1 // pred_region
      %17 = vsyncadd [#allocation5], 0
      %s18 = sshll.u32 %s0, 4
      %s19 = int_to_ptr.hbm [resolvable:$true] %s18
      %s20 = sshll.u32 [#allocation4], 4
      %s21 = int_to_ptr.vmem [resolvable:$true] %s20
      %26 = dma.hbm_to_vmem [thread:$0]  %s19, 256, %s21, [#allocation5], 128, 128, 8
    $region5: #{tpu_custom_call.1} parent=1 // pred_fallthru
      _
    // Predicated region
    $region6: #{tpu_custom_call.1} parent=1 // pred_check
      _
    $region7: #{tpu_custom_call.1} parent=1 // pred_check_branch
      %28 = sbr.rel (0) target = $region9
    $region8: #{tpu_custom_call.1} parent=1 // pred_region
      %30 = vsyncadd [#allocation8], 0
      %s31 = sshll.u32 %s1, 4
      %s32 = int_to_ptr.hbm [resolvable:$true] %s31
      %s33 = sshll.u32 [#allocation7], 4
      %s34 = int_to_ptr.vmem [resolvable:$true] %s33
      %39 = dma.hbm_to_vmem [thread:$0]  %s32, 256, %s34, [#allocation8], 128, 128, 8
    $region9: #{tpu_custom_call.1} parent=1 // pred_fallthru
      _
    // Predicated region
    $region10: #{tpu_custom_call.1} parent=1 // pred_check
      _
    $region11: #{tpu_custom_call.1} parent=1 // pred_check_branch
      %41 = sbr.rel (0) target = $region13
    $region12: #{tpu_custom_call.1} parent=1 // pred_region
      _
    $region13: #{tpu_custom_call.1} parent=1 // pred_fallthru
      _
    // Predicated region
    $region14: #{tpu_custom_call.1} parent=1 // pred_check
      _
    $region15: #{tpu_custom_call.1} parent=1 // pred_check_branch
      %43 = sbr.rel (0) target = $region17
    $region16: #{tpu_custom_call.1} parent=1 // pred_region
      _
    $region17: #{tpu_custom_call.1} parent=1 // pred_fallthru
      _
    // Predicated region
    $region18: #{tpu_custom_call.1} parent=1 // pred_check
      _
    $region19: #{tpu_custom_call.1} parent=1 // pred_check_branch
      %45 = sbr.rel (0) target = $region21
    $region20: #{tpu_custom_call.1} parent=1 // pred_region
      _
    $region21: #{tpu_custom_call.1} parent=1 // pred_fallthru
      _
    // Predicated region
    $region22: #{tpu_custom_call.1} parent=1 // pred_check
      _
    $region23: #{tpu_custom_call.1} parent=1 // pred_check_branch
      %47 = sbr.rel (0) target = $region25
    $region24: #{tpu_custom_call.1} parent=1 // pred_region
      _
    $region25: #{tpu_custom_call.1} parent=1 // pred_fallthru
      _
    // Predicated region
    $region26: #{tpu_custom_call.1} parent=1 // pred_check
      _
    $region27: #{tpu_custom_call.1} parent=1 // pred_check_branch
      %49 = sbr.rel (0) target = $region29
    $region28: #{tpu_custom_call.1} parent=1 // pred_region
      %51 = dma.done [#allocation5], 256
    $region29: #{tpu_custom_call.1} parent=1 // pred_fallthru
      _
    // Predicated region
    $region30: #{tpu_custom_call.1} parent=1 // pred_check
      _
    $region31: #{tpu_custom_call.1} parent=1 // pred_check_branch
      %53 = sbr.rel (0) target = $region33
    $region32: #{tpu_custom_call.1} parent=1 // pred_region
      %55 = dma.done [#allocation8], 256
    $region33: #{tpu_custom_call.1} parent=1 // pred_fallthru
      _
    %vm56 = vcmask 3072
    %57 = vst.msk [vmem:[#allocation2] sm:$0xf] %vm56, 0.0
    %58 = vst.msk [vmem:[#allocation3] sm:$0xf] %vm56, 0.0
    loop: start=0, step=1, limit=2
    $region34: #{tpu_custom_call.1} parent=1 // loop_pre_header
      _
    $region35: #{tpu_custom_call.1} parent=1 // loop_header
      %s60 = sphi 0, %s64
      %p61 = scmp.ge.s32.totalorder %s60, 2
    $region36: #{tpu_custom_call.1} parent=1 // loop_header_branch
      %63 = sbr.rel (%p61) target = $region40
    $region37: #{tpu_custom_call.1} parent=1 // loop_body
      %v65 = vld [vmem:[%s2] sm:$0xf]
      %s66 = smul.u32 %s60, 2
      %s67 = smul.addr %s66, 4
      %s68 = scalar_lea.vmem [#allocation4], %s67
      %v69 = vld [vmem:[%s68] sm:$0xff]
      %v70 = vld [vmem:[%s3] sm:$0xf]
      %s71 = smul.addr %s66, 4
      %s72 = scalar_lea.vmem [#allocation7], %s71
      %v73 = vld [vmem:[%s72] sm:$0xff]
      %75 = vst [vmem:[#allocation1] ss:$2 sm:$0xff] %v73
      %v76 = vld.sshfl [vmem:[#allocation1] sm:$0xff pattern:$0x75316420]
      %v77 = vld.sshfl [vmem:[#allocation1 + $0x8] sm:$0xff pattern:$0x75316420]
      %vm78 = vcmask 31744
      %v80 = vsel %vm78, %v70, 0
      %vm82 = vcmask 1043456
      %v83 = vsel %vm82, %v76, 0
      %v85 = vsel %vm82, %v77, 0
      %87 = vmatpush.msra.mxu0 0.0
      %88 = vmatpush.msra.mxu0 0.0
      %89 = vmatpush.msra.mxu0 0.0
      %90 = vmatpush.msra.mxu0 0.0
      %91 = vmatpush.msra.mxu0 0.0
      %92 = vmatpush.msra.mxu0 0.0
      %93 = vmatpush.msra.mxu0 0.0
      %94 = vmatpush.msra.mxu0 0.0
      %95 = vmatpush.msra.mxu0 0.0
      %96 = vmatpush.msra.mxu0 0.0
      %97 = vmatpush.msra.mxu0 0.0
      %98 = vmatpush.msra.mxu0 0.0
      %99 = vmatpush.msra.mxu0 0.0
      %100 = vmatpush.msra.mxu0 0.0
      %101 = vmatpush.msra.mxu0 0.0
      %102 = vmatpush.msra.mxu0 %v83
      %103 = vmatmul.f32.gmra.mxu0 %v80
      %v104 = vpop.f32.mrf.mxu0
      %v105 = vadd.f32 0.0, %v104
      %106 = vdwg.mxu0
      %107 = vmatpush.msra.mxu0 0.0
      %108 = vmatpush.msra.mxu0 0.0
      %109 = vmatpush.msra.mxu0 0.0
      %110 = vmatpush.msra.mxu0 0.0
      %111 = vmatpush.msra.mxu0 0.0
      %112 = vmatpush.msra.mxu0 0.0
      %113 = vmatpush.msra.mxu0 0.0
      %114 = vmatpush.msra.mxu0 0.0
      %115 = vmatpush.msra.mxu0 0.0
      %116 = vmatpush.msra.mxu0 0.0
      %117 = vmatpush.msra.mxu0 0.0
      %118 = vmatpush.msra.mxu0 0.0
      %119 = vmatpush.msra.mxu0 0.0
      %120 = vmatpush.msra.mxu0 0.0
      %121 = vmatpush.msra.mxu0 0.0
      %122 = vmatpush.msra.mxu0 %v85
      %123 = vmatmul.f32.gmra.mxu0 %v80
      %v124 = vpop.f32.mrf.mxu0
      %v125 = vadd.f32 0.0, %v124
      %126 = vdwg.mxu0
      %128 = vst [vmem:[#allocation1] ss:$2 sm:$0xff] %v69
      %v129 = vld.sshfl [vmem:[#allocation1] sm:$0xff pattern:$0x75316420]
      %v130 = vld.sshfl [vmem:[#allocation1 + $0x8] sm:$0xff pattern:$0x75316420]
      %v132 = vsel %vm78, %v65, 0
      %v134 = vsel %vm82, %v129, 0
      %v136 = vsel %vm82, %v130, 0
      %138 = vmatpush.msra.mxu0 0.0
      %139 = vmatpush.msra.mxu0 0.0
      %140 = vmatpush.msra.mxu0 0.0
      %141 = vmatpush.msra.mxu0 0.0
      %142 = vmatpush.msra.mxu0 0.0
      %143 = vmatpush.msra.mxu0 0.0
      %144 = vmatpush.msra.mxu0 0.0
      %145 = vmatpush.msra.mxu0 0.0
      %146 = vmatpush.msra.mxu0 0.0
      %147 = vmatpush.msra.mxu0 0.0
      %148 = vmatpush.msra.mxu0 0.0
      %149 = vmatpush.msra.mxu0 0.0
      %150 = vmatpush.msra.mxu0 0.0
      %151 = vmatpush.msra.mxu0 0.0
      %152 = vmatpush.msra.mxu0 0.0
      %153 = vmatpush.msra.mxu0 %v134
      %154 = vmatmul.f32.gmra.mxu0 %v132
      %v155 = vpop.f32.mrf.mxu0
      %v156 = vadd.f32 %v105, %v155
      %157 = vdwg.mxu0
      %158 = vmatpush.msra.mxu0 0.0
      %159 = vmatpush.msra.mxu0 0.0
      %160 = vmatpush.msra.mxu0 0.0
      %161 = vmatpush.msra.mxu0 0.0
      %162 = vmatpush.msra.mxu0 0.0
      %163 = vmatpush.msra.mxu0 0.0
      %164 = vmatpush.msra.mxu0 0.0
      %165 = vmatpush.msra.mxu0 0.0
      %166 = vmatpush.msra.mxu0 0.0
      %167 = vmatpush.msra.mxu0 0.0
      %168 = vmatpush.msra.mxu0 0.0
      %169 = vmatpush.msra.mxu0 0.0
      %170 = vmatpush.msra.mxu0 0.0
      %171 = vmatpush.msra.mxu0 0.0
      %172 = vmatpush.msra.mxu0 0.0
      %173 = vmatpush.msra.mxu0 %v136
      %174 = vmatmul.f32.gmra.mxu0 %v132
      %v175 = vpop.f32.mrf.mxu0
      %v176 = vadd.f32 %v125, %v175
      %177 = vdwg.mxu0
      %v178 = vld [vmem:[#allocation2] sm:$0xf]
      %v179 = vsel %vm82, %v156, 0.0
      %v180 = vsel %vm82, %v176, 0.0
      %v181 = vadd.f32 %v179, %v180
      %182 = vadd.xlane.f32.xlu0 %v181
      %v183 = vpop.xlane.xlu0 %182
      %v184 = vadd.f32 %v178, %v183
      %185 = vst.msk [vmem:[#allocation2] sm:$0xf] %vm56, %v184
      %v186 = vld [vmem:[#allocation3] sm:$0xf]
      %v187 = vmul.f32 %v156, %v156
      %v188 = vmul.f32 %v176, %v176
      %v189 = vsel %vm82, %v187, 0.0
      %v190 = vsel %vm82, %v188, 0.0
      %v191 = vadd.f32 %v189, %v190
      %192 = vadd.xlane.f32.xlu0 %v191
      %v193 = vpop.xlane.xlu0 %192
      %v194 = vadd.f32 %v186, %v193
      %195 = vst.msk [vmem:[#allocation3] sm:$0xf] %vm56, %v194
    $region38: #{tpu_custom_call.1} parent=1 // loop_footer
      %s64 = sadd.s32 1, %s60
    $region39: #{tpu_custom_call.1} parent=1 // loop_footer_branch
      %59 = sbr.rel target = $region35
    $region40: #{tpu_custom_call.1} parent=1 // loop_exit
      _
    %v196 = vld [vmem:[#allocation2] sm:$0xf]
    %v197 = vmul.f32 %v196, 0.001953125
    %v198 = vld [vmem:[#allocation3] sm:$0xf]
    %v199 = vmul.f32 %v198, 0.001953125
    %v200 = vmul.f32 %v197, %v197
    %v201 = vsub.f32 %v199, %v200
    %v202 = vadd.f32 %v201, 0.001
    %v203 = vrsqrt.pop %v202
    %v204 = vmul.f32 %v203, %v202
    %v205 = vmul.f32 %v204, %v203
    %v206 = vmul.f32 0.5, %v205
    %v207 = vsub.f32 1.5, %v206
    %v208 = vmul.f32 %v203, %v207
    %vm209 = vweird.f32 %v202
    %vm210 = vweird.f32 %v203
    %vm211 = vmor %vm209, %vm210
    %v212 = vsel %vm211, %v203, %v208
    %v213 = vld [vmem:[%s4] sm:$0xf]
    %v214 = vmul.f32 %v213, %v212
    %v215 = vld [vmem:[%s5] sm:$0xf]
    %v216 = vmul.f32 %v197, %v214
    %v217 = vsub.f32 %v215, %v216
    loop: start=0, step=1, limit=2
    $region41: #{tpu_custom_call.1} parent=1 // loop_pre_header
      _
    $region42: #{tpu_custom_call.1} parent=1 // loop_header
      %s219 = sphi 0, %s223
      %p220 = scmp.ge.s32.totalorder %s219, 2
    $region43: #{tpu_custom_call.1} parent=1 // loop_header_branch
      %222 = sbr.rel (%p220) target = $region47
    $region44: #{tpu_custom_call.1} parent=1 // loop_body
      %v224 = vld [vmem:[%s2] sm:$0xf]
      %s225 = smul.u32 %s219, 2
      %s226 = smul.addr %s225, 4
      %s227 = scalar_lea.vmem [#allocation4], %s226
      %v228 = vld [vmem:[%s227] sm:$0xff]
      %v229 = vld [vmem:[%s3] sm:$0xf]
      %s230 = smul.addr %s225, 4
      %s231 = scalar_lea.vmem [#allocation7], %s230
      %v232 = vld [vmem:[%s231] sm:$0xff]
      %234 = vst [vmem:[#allocation1] ss:$2 sm:$0xff] %v232
      %v235 = vld.sshfl [vmem:[#allocation1] sm:$0xff pattern:$0x75316420]
      %v236 = vld.sshfl [vmem:[#allocation1 + $0x8] sm:$0xff pattern:$0x75316420]
      %vm237 = vcmask 31744
      %v239 = vsel %vm237, %v229, 0
      %vm241 = vcmask 1043456
      %v242 = vsel %vm241, %v235, 0
      %v244 = vsel %vm241, %v236, 0
      %246 = vmatpush.msra.mxu0 0.0
      %247 = vmatpush.msra.mxu0 0.0
      %248 = vmatpush.msra.mxu0 0.0
      %249 = vmatpush.msra.mxu0 0.0
      %250 = vmatpush.msra.mxu0 0.0
      %251 = vmatpush.msra.mxu0 0.0
      %252 = vmatpush.msra.mxu0 0.0
      %253 = vmatpush.msra.mxu0 0.0
      %254 = vmatpush.msra.mxu0 0.0
      %255 = vmatpush.msra.mxu0 0.0
      %256 = vmatpush.msra.mxu0 0.0
      %257 = vmatpush.msra.mxu0 0.0
      %258 = vmatpush.msra.mxu0 0.0
      %259 = vmatpush.msra.mxu0 0.0
      %260 = vmatpush.msra.mxu0 0.0
      %261 = vmatpush.msra.mxu0 %v242
      %262 = vmatmul.f32.gmra.mxu0 %v239
      %v263 = vpop.f32.mrf.mxu0
      %v264 = vadd.f32 0.0, %v263
      %265 = vdwg.mxu0
      %266 = vmatpush.msra.mxu0 0.0
      %267 = vmatpush.msra.mxu0 0.0
      %268 = vmatpush.msra.mxu0 0.0
      %269 = vmatpush.msra.mxu0 0.0
      %270 = vmatpush.msra.mxu0 0.0
      %271 = vmatpush.msra.mxu0 0.0
      %272 = vmatpush.msra.mxu0 0.0
      %273 = vmatpush.msra.mxu0 0.0
      %274 = vmatpush.msra.mxu0 0.0
      %275 = vmatpush.msra.mxu0 0.0
      %276 = vmatpush.msra.mxu0 0.0
      %277 = vmatpush.msra.mxu0 0.0
      %278 = vmatpush.msra.mxu0 0.0
      %279 = vmatpush.msra.mxu0 0.0
      %280 = vmatpush.msra.mxu0 0.0
      %281 = vmatpush.msra.mxu0 %v244
      %282 = vmatmul.f32.gmra.mxu0 %v239
      %v283 = vpop.f32.mrf.mxu0
      %v284 = vadd.f32 0.0, %v283
      %285 = vdwg.mxu0
      %287 = vst [vmem:[#allocation1] ss:$2 sm:$0xff] %v228
      %v288 = vld.sshfl [vmem:[#allocation1] sm:$0xff pattern:$0x75316420]
      %v289 = vld.sshfl [vmem:[#allocation1 + $0x8] sm:$0xff pattern:$0x75316420]
      %v291 = vsel %vm237, %v224, 0
      %v293 = vsel %vm241, %v288, 0
      %v295 = vsel %vm241, %v289, 0
      %297 = vmatpush.msra.mxu0 0.0
      %298 = vmatpush.msra.mxu0 0.0
      %299 = vmatpush.msra.mxu0 0.0
      %300 = vmatpush.msra.mxu0 0.0
      %301 = vmatpush.msra.mxu0 0.0
      %302 = vmatpush.msra.mxu0 0.0
      %303 = vmatpush.msra.mxu0 0.0
      %304 = vmatpush.msra.mxu0 0.0
      %305 = vmatpush.msra.mxu0 0.0
      %306 = vmatpush.msra.mxu0 0.0
      %307 = vmatpush.msra.mxu0 0.0
      %308 = vmatpush.msra.mxu0 0.0
      %309 = vmatpush.msra.mxu0 0.0
      %310 = vmatpush.msra.mxu0 0.0
      %311 = vmatpush.msra.mxu0 0.0
      %312 = vmatpush.msra.mxu0 %v293
      %313 = vmatmul.f32.gmra.mxu0 %v291
      %v314 = vpop.f32.mrf.mxu0
      %v315 = vadd.f32 %v264, %v314
      %316 = vdwg.mxu0
      %317 = vmatpush.msra.mxu0 0.0
      %318 = vmatpush.msra.mxu0 0.0
      %319 = vmatpush.msra.mxu0 0.0
      %320 = vmatpush.msra.mxu0 0.0
      %321 = vmatpush.msra.mxu0 0.0
      %322 = vmatpush.msra.mxu0 0.0
      %323 = vmatpush.msra.mxu0 0.0
      %324 = vmatpush.msra.mxu0 0.0
      %325 = vmatpush.msra.mxu0 0.0
      %326 = vmatpush.msra.mxu0 0.0
      %327 = vmatpush.msra.mxu0 0.0
      %328 = vmatpush.msra.mxu0 0.0
      %329 = vmatpush.msra.mxu0 0.0
      %330 = vmatpush.msra.mxu0 0.0
      %331 = vmatpush.msra.mxu0 0.0
      %332 = vmatpush.msra.mxu0 %v295
      %333 = vmatmul.f32.gmra.mxu0 %v291
      %v334 = vpop.f32.mrf.mxu0
      %v335 = vadd.f32 %v284, %v334
      %336 = vdwg.mxu0
      %338 = vset.pattern.permute.xlu0 0
      %339 = vperm.xlu0 %338, %v214
      %v340 = vpop.permute.xlu0 %339
      %v342 = vmul.f32 %v315, %v340
      %v343 = vmul.f32 %v335, %v340
      %345 = vset.pattern.permute.xlu0 0
      %346 = vperm.xlu0 %345, %v217
      %v347 = vpop.permute.xlu0 %346
      %v349 = vadd.f32 %v342, %v347
      %v350 = vadd.f32 %v343, %v347
      %v353 = vrot.slane %v350, 4
      %v354 = vsel %vm241, %v349, %v353
      %s356 = smul.addr %s225, 4
      %s357 = scalar_lea.vmem [#allocation9], %s356
      %358 = vst [vmem:[%s357] sm:$0xff] %v354
    $region45: #{tpu_custom_call.1} parent=1 // loop_footer
      %s223 = sadd.s32 1, %s219
    $region46: #{tpu_custom_call.1} parent=1 // loop_footer_branch
      %218 = sbr.rel target = $region42
    $region47: #{tpu_custom_call.1} parent=1 // loop_exit
      _
    // Predicated region
    $region48: #{tpu_custom_call.1} parent=1 // pred_check
      _
    $region49: #{tpu_custom_call.1} parent=1 // pred_check_branch
      %360 = sbr.rel (0) target = $region51
    $region50: #{tpu_custom_call.1} parent=1 // pred_region
      %362 = vsyncadd [#allocation6], 0
      %s363 = sshll.u32 [#allocation9], 4
      %s364 = int_to_ptr.vmem [resolvable:$true] %s363
      %s365 = sshll.u32 %s6, 4
      %s366 = int_to_ptr.hbm [resolvable:$true] %s365
      %371 = dma.vmem_to_hbm [thread:$0]  %s364, 256, %s366, [#allocation6], 128, 128, 8
    $region51: #{tpu_custom_call.1} parent=1 // pred_fallthru
      _
    // Predicated region
    $region52: #{tpu_custom_call.1} parent=1 // pred_check
      _
    $region53: #{tpu_custom_call.1} parent=1 // pred_check_branch
      %373 = sbr.rel (0) target = $region55
    $region54: #{tpu_custom_call.1} parent=1 // pred_region
      %375 = dma.done [#allocation6], 256
    $region55: #{tpu_custom_call.1} parent=1 // pred_fallthru
      _
    %376 = vsyncpa [#allocation5], 1
    %377 = vsyncpa [#allocation8], 1
    %378 = vsyncpa [#allocation6], 1

</llo_original>
